<compile_context>
chip_gen: v7x
topology: tpu7x:2x2x1
jax: 0.10.0
libtpu: 0.0.40
codegen_flags: <defaults>
</compile_context>

<pallas_src>
import functools

import jax
import jax.numpy as jnp
from jax.experimental import pallas as pl
from jax.experimental.pallas import tpu as pltpu

NEG_INF = -1e30
LANE = 128                      # pad output feature dim to a multiple of this (dense stores)


def _round_up(v, m):
    return (v + m - 1) // m * m


def _tpu_config():
    """Chip-aware knobs: scoped-VMEM budget, attention dst tile, elementwise dtype."""
    try:
        cap = pltpu.get_tpu_info().vmem_capacity_bytes
    except Exception:
        cap = 64 * 1024 * 1024                                  # conservative (v7x-sized) fallback
    # leave ~25% headroom for Mosaic internal scratch / double-buffering:
    vmem_limit = min(cap * 3 // 4, 100 * 1024 * 1024)           # ~48 MiB on v7x, ~96 MiB on v5e/v6e
    attn_tile = 512 if vmem_limit >= 80 * 1024 * 1024 else 256  # bigger dst tile where VMEM allows
    try:
        kind = jax.devices()[0].device_kind.lower()
    except Exception:
        kind = ""
    # v5e and earlier have no bf16 VPU/EUP -> keep elementwise/exp math in f32 there.
    old_chip = any(("v%d" % i) in kind for i in (2, 3, 4, 5))
    e_dtype = jnp.float32 if old_chip else jnp.bfloat16
    return int(vmem_limit), attn_tile, e_dtype


VMEM_LIMIT, ATTN_TILE, E_DTYPE = _tpu_config()


def gat_project_kernel(x_ref, w_ref, xs_ref, a_dst_ref, a_srcT_ref, *, heads, hc):
    """Per node-row tile: one fused MXU pass produces xs and both attention scores."""
    y = jnp.dot(x_ref[...], w_ref[...], preferred_element_type=jnp.float32)   # [T, hc+2H] f32
    xs_ref[...] = y[:, :hc].astype(xs_ref.dtype)
    a_srcT_ref[...] = y[:, hc:hc + heads].T.astype(a_srcT_ref.dtype)          # [H, T] small transpose
    a_dst_ref[...] = y[:, hc + heads:].astype(a_dst_ref.dtype)                # [T, H]


def gat_attn_kernel(adj_ref, a_dst_ref, a_srcT_ref, xs_ref, bias_ref, out_ref,
                    *, heads, out_ch, out_cols, apply_relu):
    """Per destination-row tile: masked softmax over incoming edges + aggregation."""
    mask = adj_ref[...] != 0           # [T, Ns] bool from int8 adjacency — hoisted out of head loop
    a_dst = a_dst_ref[...]             # [T, H]   e_dtype (bf16 on v6e/v7x, f32 on v5e)
    a_srcT = a_srcT_ref[...]           # [H, Ns]  e_dtype
    xs = xs_ref[...]                   # [Ns, H*C] bf16
    e_dtype = a_dst.dtype
    neg_inf = jnp.asarray(NEG_INF, e_dtype)
    m_floor = jnp.asarray(0.5 * NEG_INF, e_dtype)   # guard zero-in-degree rows (all-masked -> p == 0)

    outs = []
    for h in range(heads):             # static unrolled loop over heads
        e = a_dst[:, h:h + 1] + a_srcT[h:h + 1, :]            # [T, Ns] broadcast add
        e = jnp.maximum(e, 0.2 * e)                           # leaky_relu(0.2) (slope < 1)
        e = jnp.where(mask, e, neg_inf)                       # mask non-edges
        m = jnp.maximum(jnp.max(e, axis=1, keepdims=True), m_floor)
        p = jnp.exp(e - m)                                    # masked entries underflow to exactly 0
        s = jnp.sum(p.astype(jnp.float32), axis=1, keepdims=True)   # f32 row-sum for accuracy
        # Aggregate first (bf16 MXU operands, f32 accumulate), normalize after (EUP reciprocal):
        #   (p @ xs_h) / (s + 1e-16)  ==  alpha @ xs_h   (PyG softmax epsilon kept)
        msg = jnp.dot(p.astype(xs.dtype), xs[:, h * out_ch:(h + 1) * out_ch],
                      preferred_element_type=jnp.float32)     # [T, C]
        outs.append(msg * pl.reciprocal(s + 1e-16, approx=True))

    out = outs[0] if heads == 1 else jnp.concatenate(outs, axis=-1)    # [T, H*C]
    pad = out_cols - heads * out_ch
    if pad:                                                   # lane-dense [T, out_cols] store
        out = jnp.concatenate([out, jnp.zeros((out.shape[0], pad), jnp.float32)], axis=-1)
    out = out + bias_ref[...]
    if apply_relu:
        out = jnp.maximum(out, 0.0)
    out_ref[...] = out


def gat_conv(x_pad, adj, params, *, heads, out_ch, apply_relu):
    """One GATConv layer. x_pad: [n_pad, f_x] (zero-padded rows/cols), adj: [n_pad, n_pad] int8.
    Returns the padded [n_pad, round_up(heads*out_ch, 128)] output (extra cols are exactly 0)."""
    n_pad, f_x = x_pad.shape
    f_w = params["w_src"].shape[0]
    hc = heads * out_ch
    out_cols = _round_up(hc, LANE)

    attn_tile = min(n_pad, ATTN_TILE)
    # Projection is purely mem-bound: use a larger row tile (must still divide n_pad).
    proj_tile = attn_tile
    for mult in (8, 4, 2):
        cand = attn_tile * mult
        if cand <= 2048 and n_pad % cand == 0:
            proj_tile = cand
            break

    # Parameter folding (once): a_src = (x @ W_src)·att_src == x @ (W_src·att_src), same for dst.
    att_src_p = jnp.einsum("fhc,hc->fh",
                           params["w_src"].reshape(f_w, heads, out_ch), params["att_src"])
    att_dst_p = jnp.einsum("fhc,hc->fh",
                           params["w_dst"].reshape(f_w, heads, out_ch), params["att_dst"])
    w_fused = jnp.concatenate([params["w_src"], att_src_p, att_dst_p], axis=1)   # [f_w, hc+2H]
    if f_x > f_w:   # x carries zero-padded feature columns from the previous layer's lane padding
        w_fused = jnp.pad(w_fused, ((0, f_x - f_w), (0, 0)))
    w_fused = w_fused.astype(jnp.bfloat16)
    wcols = hc + 2 * heads
    bias = jnp.zeros((1, out_cols), jnp.float32).at[0, :hc].set(params["bias"])

    x_bf = x_pad.astype(jnp.bfloat16)
    cparams = pltpu.CompilerParams(dimension_semantics=("parallel",),
                                   vmem_limit_bytes=VMEM_LIMIT)

    xs, a_dst, a_srcT = pl.pallas_call(
        functools.partial(gat_project_kernel, heads=heads, hc=hc),
        grid=(n_pad // proj_tile,),
        in_specs=[pl.BlockSpec((proj_tile, f_x), lambda i: (i, 0)),     # x tile
                  pl.BlockSpec((f_x, wcols), lambda i: (0, 0))],        # fused weights (resident)
        out_specs=[pl.BlockSpec((proj_tile, hc), lambda i: (i, 0)),
                   pl.BlockSpec((proj_tile, heads), lambda i: (i, 0)),
                   pl.BlockSpec((heads, proj_tile), lambda i: (0, i))],
        out_shape=(jax.ShapeDtypeStruct((n_pad, hc), jnp.bfloat16),
                   jax.ShapeDtypeStruct((n_pad, heads), E_DTYPE),
                   jax.ShapeDtypeStruct((heads, n_pad), E_DTYPE)),
        compiler_params=cparams,
    )(x_bf, w_fused)

    out = pl.pallas_call(
        functools.partial(gat_attn_kernel, heads=heads, out_ch=out_ch,
                          out_cols=out_cols, apply_relu=apply_relu),
        grid=(n_pad // attn_tile,),
        in_specs=[pl.BlockSpec((attn_tile, n_pad), lambda i: (i, 0)),   # int8 adjacency dst-tile
                  pl.BlockSpec((attn_tile, heads), lambda i: (i, 0)),   # a_dst dst-tile
                  pl.BlockSpec((heads, n_pad), lambda i: (0, 0)),       # a_srcT (resident)
                  pl.BlockSpec((n_pad, hc), lambda i: (0, 0)),          # xs (resident)
                  pl.BlockSpec((1, out_cols), lambda i: (0, 0))],       # bias
        out_specs=pl.BlockSpec((attn_tile, out_cols), lambda i: (i, 0)),
        out_shape=jax.ShapeDtypeStruct((n_pad, out_cols), jnp.float32),
        compiler_params=cparams,
    )(adj, a_dst, a_srcT, xs, bias)

    return out


def gat_forward(x, edge_index, params, *, hidden, heads):
    """GAT.forward: relu(conv1(x, ei)) -> conv2(., ei)."""
    n = x.shape[0]
    n_pad = _round_up(n, 32) if n < ATTN_TILE else _round_up(n, ATTN_TILE)
    src, dst = edge_index[0], edge_index[1]
    # dense int8 adjacency mask: adj[dst, src] = 1 (add_self_loops=False -> edges only);
    # padded rows/cols stay 0, so padded nodes never act as sources.
    adj = jnp.zeros((n_pad, n_pad), jnp.int8).at[dst, src].set(1)
    # TODO(synk): for large sparse graphs replace the dense adjacency with a CSR/blocked layout
    # (PrefetchScalarGridSpec) plus a source-axis online-softmax grid to bound VMEM on v7x.
    x_pad = jnp.pad(x, ((0, n_pad - n), (0, 0))) if n_pad != n else x
    h1 = gat_conv(x_pad, adj, params["conv1"], heads=heads, out_ch=hidden, apply_relu=True)
    # h1 stays in its padded [n_pad, 128] form; conv2's weights get matching zero rows.
    h2 = gat_conv(h1, adj, params["conv2"], heads=1, out_ch=hidden, apply_relu=False)
    return h2[:n, :hidden]


def init_gatconv(key, f_in, out_ch, heads):
    k = jax.random.split(key, 4)
    s_lin = 1.0 / jnp.sqrt(jnp.float32(f_in))
    s_att = 1.0 / jnp.sqrt(jnp.float32(out_ch))
    return dict(
        w_src=jax.random.normal(k[0], (f_in, heads * out_ch), jnp.float32) * s_lin,
        w_dst=jax.random.normal(k[1], (f_in, heads * out_ch), jnp.float32) * s_lin,
        att_src=jax.random.normal(k[2], (heads, out_ch), jnp.float32) * s_att,
        att_dst=jax.random.normal(k[3], (heads, out_ch), jnp.float32) * s_att,
        bias=jnp.zeros((heads * out_ch,), jnp.float32),
    )


if __name__ == "__main__":
    N, F_IN, HIDDEN, HEADS = 32, 16, 8, 8

    key = jax.random.PRNGKey(0)
    kx, k1, k2 = jax.random.split(key, 3)

    x = jax.random.normal(kx, (N, F_IN), jnp.float32)

    # deterministic duplicate-free edge list: each node i receives from i+1, i+3, i+7 (mod N)
    idx = jnp.arange(N, dtype=jnp.int32)
    src = jnp.concatenate([(idx + 1) % N, (idx + 3) % N, (idx + 7) % N])
    dst = jnp.concatenate([idx, idx, idx])
    edge_index = jnp.stack([src, dst])          # [2, 3N] — row0 = source, row1 = target

    params = {
        "conv1": init_gatconv(k1, F_IN, HIDDEN, HEADS),
        "conv2": init_gatconv(k2, HEADS * HIDDEN, HIDDEN, 1),
    }

    out = gat_forward(x, edge_index, params, hidden=HIDDEN, heads=HEADS)
    out = jax.block_until_ready(out)
    assert out.shape == (N, HIDDEN) and out.dtype == jnp.float32
    assert bool(jnp.all(jnp.isfinite(out)))
    print("KERNEL_OK")
</pallas_src>

<mosaic_0001>
module attributes {stable_mosaic.version = 11 : i64} {
  func.func @gat_project_kernel(%arg0: i32, %arg1: memref<32x16xbf16, #tpu.memory_space<vmem>>, %arg2: memref<16x80xbf16, #tpu.memory_space<vmem>>, %arg3: memref<32x64xbf16, #tpu.memory_space<vmem>>, %arg4: memref<32x8xbf16, #tpu.memory_space<vmem>>, %arg5: memref<8x32xbf16, #tpu.memory_space<vmem>>) attributes {dimension_semantics = [#tpu.dimension_semantics<parallel>], iteration_bounds = array<i64: 1>, scalar_prefetch = 0 : i64, scratch_operands = 0 : i64, tpu.core_type = #tpu.core_type<tc>, window_params = [{transform_indices = @transform_0, window_bounds = array<i64: 32, 16>}, {pipeline_mode = #tpu.pipeline_mode<synchronous>, transform_indices = @transform_1, window_bounds = array<i64: 16, 80>}, {transform_indices = @transform_2, window_bounds = array<i64: 32, 64>}, {transform_indices = @transform_3, window_bounds = array<i64: 32, 8>}, {transform_indices = @transform_4, window_bounds = array<i64: 8, 32>}]} {
    %c0 = arith.constant 0 : index
    %c0_0 = arith.constant 0 : index
    %0 = vector.load %arg1[%c0, %c0_0] : memref<32x16xbf16, #tpu.memory_space<vmem>>, vector<32x16xbf16>
    %c0_1 = arith.constant 0 : index
    %c0_2 = arith.constant 0 : index
    %1 = vector.load %arg2[%c0_1, %c0_2] : memref<16x80xbf16, #tpu.memory_space<vmem>>, vector<16x80xbf16>
    %cst = arith.constant dense<0.000000e+00> : vector<32x80xf32>
    %2 = tpu.matmul %0, %1, %cst {dimension_numbers = #tpu.dot_dimension_numbers<[1], [0], [0], [1], [0, 0, 1, 1], [], []>} : vector<32x16xbf16>, vector<16x80xbf16>, vector<32x80xf32> -> vector<32x80xf32>
    %3 = vector.extract_strided_slice %2 {offsets = [0, 0], sizes = [32, 64], strides = [1, 1]} : vector<32x80xf32> to vector<32x64xf32>
    %4 = arith.truncf %3 : vector<32x64xf32> to vector<32x64xbf16>
    %c0_3 = arith.constant 0 : index
    %c0_4 = arith.constant 0 : index
    %5 = vector.load %arg3[%c0_3, %c0_4] : memref<32x64xbf16, #tpu.memory_space<vmem>>, vector<32x64xbf16>
    tpu.vector_store %arg3[%c0_3, %c0_4], %4 {strides = array<i32>} : memref<32x64xbf16, #tpu.memory_space<vmem>>, vector<32x64xbf16>,
    %6 = vector.extract_strided_slice %2 {offsets = [0, 64], sizes = [32, 8], strides = [1, 1]} : vector<32x80xf32> to vector<32x8xf32>
    %7 = tpu.transpose %6, [1, 0] : vector<32x8xf32> -> vector<8x32xf32>
    %8 = arith.truncf %7 : vector<8x32xf32> to vector<8x32xbf16>
    %c0_5 = arith.constant 0 : index
    %c0_6 = arith.constant 0 : index
    %9 = vector.load %arg5[%c0_5, %c0_6] : memref<8x32xbf16, #tpu.memory_space<vmem>>, vector<8x32xbf16>
    tpu.vector_store %arg5[%c0_5, %c0_6], %8 {strides = array<i32>} : memref<8x32xbf16, #tpu.memory_space<vmem>>, vector<8x32xbf16>,
    %10 = vector.extract_strided_slice %2 {offsets = [0, 72], sizes = [32, 8], strides = [1, 1]} : vector<32x80xf32> to vector<32x8xf32>
    %11 = arith.truncf %10 : vector<32x8xf32> to vector<32x8xbf16>
    %c0_7 = arith.constant 0 : index
    %c0_8 = arith.constant 0 : index
    %12 = vector.load %arg4[%c0_7, %c0_8] : memref<32x8xbf16, #tpu.memory_space<vmem>>, vector<32x8xbf16>
    tpu.vector_store %arg4[%c0_7, %c0_8], %11 {strides = array<i32>} : memref<32x8xbf16, #tpu.memory_space<vmem>>, vector<32x8xbf16>,
    return
  }
  func.func @transform_0(%arg0: i32) -> (i32, i32) {
    %c0_i32 = arith.constant 0 : i32
    %c0_i32_0 = arith.constant 0 : i32
    return %arg0, %c0_i32 : i32, i32
  }
  func.func @transform_1(%arg0: i32) -> (i32, i32) {
    %c0_i32 = arith.constant 0 : i32
    %c0_i32_0 = arith.constant 0 : i32
    %c0_i32_1 = arith.constant 0 : i32
    return %c0_i32, %c0_i32_0 : i32, i32
  }
  func.func @transform_2(%arg0: i32) -> (i32, i32) {
    %c0_i32 = arith.constant 0 : i32
    %c0_i32_0 = arith.constant 0 : i32
    return %arg0, %c0_i32 : i32, i32
  }
  func.func @transform_3(%arg0: i32) -> (i32, i32) {
    %c0_i32 = arith.constant 0 : i32
    %c0_i32_0 = arith.constant 0 : i32
    return %arg0, %c0_i32 : i32, i32
  }
  func.func @transform_4(%arg0: i32) -> (i32, i32) {
    %c0_i32 = arith.constant 0 : i32
    %c0_i32_0 = arith.constant 0 : i32
    return %c0_i32, %arg0 : i32, i32
  }
}

</mosaic_0001>

<llo_original>
// kernel: tpu_custom_call.1
$region0: #{tpu_custom_call.1}
  #allocation0 [shape = 'u32[]', space=smem, size = 0x4, offset = 0x4, fixed_abs, tag = 'smem constant byte address 0x4 - core index']
  #allocation1 [shape = 'u32[144,128]{1,0:T(1,128)}', space=vmem, size = 0x12000, scoped, tag = 'internal scratch']
  %s0 = inlined_call_operand.vmem [shape: bf16[32,16], index: 0, kind: input, shape index: {}]
  %s1 = inlined_call_operand.vmem [shape: bf16[16,80], index: 1, kind: input, shape index: {}]
  %s2 = inlined_call_operand.hbm [shape: bf16[32,64], index: 2, kind: output, shape index: {0}]
  %s3 = inlined_call_operand.vmem [shape: bf16[32,8], index: 3, kind: output, shape index: {1}]
  %s4 = inlined_call_operand.hbm [shape: bf16[8,32], index: 4, kind: output, shape index: {2}]
  %5 = xla_tuple %s2, %s3, %s4
  %s6 = sld [smem:[#allocation0]]
  $region34: #{tpu_custom_call.1} parent=0
    _
  %s8 = ssub.s32 1, %s6
  %s9 = scalar_select 0, %s8, %s6
  $region1: #{tpu_custom_call.1} parent=0
    #allocation2 [shape = 'u8[8192]{0}', space=vmem, size = 0x2000, scoped, tag = 'output window, operand 0, single buffered']
    #allocation3 [shape = 's32[1]{0}', space=sflag, size = 0x4, scoped, tag = 'scoped memory for tpu_custom_call.1']
    #allocation4 [shape = 'u8[2048]{0}', space=vmem, size = 0x800, scoped, tag = 'output window, operand 2, single buffered']
    #allocation5 [shape = 's32[1]{0}', space=sflag, size = 0x4, scoped, tag = 'scoped memory for tpu_custom_call.1']
    %10 = vsyncpa [#allocation3], 0
    %11 = vsyncpa [#allocation5], 0
    // Predicated region
    $region2: #{tpu_custom_call.1} parent=1 // pred_check
      _
    $region3: #{tpu_custom_call.1} parent=1 // pred_check_branch
      %13 = sbr.rel (0) target = $region5
    $region4: #{tpu_custom_call.1} parent=1 // pred_region
      _
    $region5: #{tpu_custom_call.1} parent=1 // pred_fallthru
      _
    // Predicated region
    $region6: #{tpu_custom_call.1} parent=1 // pred_check
      _
    $region7: #{tpu_custom_call.1} parent=1 // pred_check_branch
      %15 = sbr.rel (0) target = $region9
    $region8: #{tpu_custom_call.1} parent=1 // pred_region
      _
    $region9: #{tpu_custom_call.1} parent=1 // pred_fallthru
      _
    %v17 = vld [vmem:[%s0] sm:$0xf]
    %v18 = vld [vmem:[%s0 + $0x4] sm:$0xf]
    %v19 = vld [vmem:[%s0 + $0x8] sm:$0xf]
    %v20 = vld [vmem:[%s0 + $0xc] sm:$0xf]
    %v21 = vld [vmem:[%s1] sm:$0xf]
    %v22 = vld [vmem:[%s1 + $0x4] sm:$0xf]
    %v27 = vunpack.c.l.b16 %v17
    %v28 = vunpack.c.l.b16 %v18
    %v29 = vunpack.c.l.b16 %v19
    %v30 = vunpack.c.l.b16 %v20
    %v31 = vpack.c.b16 %v28, %v27
    %v32 = vpack.c.b16 %v30, %v29
    %v35 = vunpack.c.l.b16 %v21
    %v36 = vunpack.c.l.b16 %v22
    %v37 = vpack.c.b16 %v36, %v35
    %vm39 = vcmask 130048
    %v41 = vsel %vm39, %v31, 0
    %v44 = vsel %vm39, %v32, 0
    %46 = vmatprep.subr.bf16.mxu0 0
    %47 = vmatpush1.bf16.msra.mxu0 %v37
    %48 = vmatprep.subr.bf16.mxu0 0
    %49 = vmatpush1.bf16.msra.mxu0 0
    %50 = vmatprep.subr.bf16.mxu0 0
    %51 = vmatpush1.bf16.msra.mxu0 0
    %52 = vmatprep.subr.bf16.mxu0 0
    %53 = vmatpush1.bf16.msra.mxu0 0
    %54 = vmatprep.subr.bf16.mxu0 0
    %55 = vmatpush1.bf16.msra.mxu0 0
    %56 = vmatprep.subr.bf16.mxu0 0
    %57 = vmatpush1.bf16.msra.mxu0 0
    %58 = vmatprep.subr.bf16.mxu0 0
    %59 = vmatpush1.bf16.msra.mxu0 0
    %60 = vmatprep.subr.bf16.mxu0 0
    %61 = vmatpush1.bf16.msra.mxu0 0
    %62 = vmatprep.subr.bf16.mxu0 0
    %63 = vmatpush1.bf16.msra.mxu0 0
    %64 = vmatprep.subr.bf16.mxu0 0
    %65 = vmatpush1.bf16.msra.mxu0 0
    %66 = vmatprep.subr.bf16.mxu0 0
    %67 = vmatpush1.bf16.msra.mxu0 0
    %68 = vmatprep.subr.bf16.mxu0 0
    %69 = vmatpush1.bf16.msra.mxu0 0
    %70 = vmatprep.subr.bf16.mxu0 0
    %71 = vmatpush1.bf16.msra.mxu0 0
    %72 = vmatprep.subr.bf16.mxu0 0
    %73 = vmatpush1.bf16.msra.mxu0 0
    %74 = vmatprep.subr.bf16.mxu0 0
    %75 = vmatpush1.bf16.msra.mxu0 0
    %76 = vmatprep.subr.bf16.mxu0 0
    %77 = vmatpush1.bf16.msra.mxu0 0
    %78 = vmatprep.mubr.bf16.mxu0 0
    %79 = vmatmul.mubr.bf16.gmra.mrb[0].mxu0 %v41
    %v80 = vpop.f32.mrb[0].mxu0
    %v81 = vadd.f32 0.0, %v80
    %v82 = vpop.f32.mrb[0].mxu0
    %v83 = vpop.f32.mrb[0].mxu0
    %v84 = vadd.f32 0.0, %v83
    %v85 = vpop.f32.mrb[0].mxu0
    %86 = vmatprep.mubr.bf16.mxu0 0
    %87 = vmatmul.mubr.bf16.gmra.mrb[0].mxu0 %v44
    %v88 = vpop.f32.mrb[0].mxu0
    %v89 = vadd.f32 0.0, %v88
    %v90 = vpop.f32.mrb[0].mxu0
    %v91 = vpop.f32.mrb[0].mxu0
    %v92 = vadd.f32 0.0, %v91
    %v93 = vpop.f32.mrb[0].mxu0
    %94 = vdwg.mxu0
    %v95 = vpack.c.bf16 %v84, %v81
    %v96 = vpack.c.bf16 %v92, %v89
    %v99 = vunpack.c.l.b16 %v95
    %v100 = vunpack.c.h.b16 %v95
    %v101 = vunpack.c.l.b16 %v96
    %v102 = vunpack.c.h.b16 %v96
    %v103 = vpack.c.b16 %v99, %v99
    %v104 = vpack.c.b16 %v100, %v100
    %v105 = vpack.c.b16 %v101, %v101
    %v106 = vpack.c.b16 %v102, %v102
    %vm111 = vcmask 519168
    %112 = vst.msk [vmem:[#allocation2] sm:$0xf] %vm111, %v103
    %113 = vst.msk [vmem:[#allocation2 + $0x4] sm:$0xf] %vm111, %v104
    %114 = vst.msk [vmem:[#allocation2 + $0x8] sm:$0xf] %vm111, %v105
    %115 = vst.msk [vmem:[#allocation2 + $0xc] sm:$0xf] %vm111, %v106
    %120 = vrot.lane.b32.xlu0 %v81, 64
    %v121 = vpop.permute.xlu0 %120
    %122 = vrot.lane.b32.xlu0 %v84, 64
    %v123 = vpop.permute.xlu0 %122
    %124 = vrot.lane.b32.xlu0 %v89, 64
    %v125 = vpop.permute.xlu0 %124
    %126 = vrot.lane.b32.xlu0 %v92, 64
    %v127 = vpop.permute.xlu0 %126
    %132 = vxpose.xlu0.b32.start [1/16] %v121, 128
    %133 = vxpose.xlu0.b32.cont [2/16] %v123, 128
    %134 = vxpose.xlu0.b32.cont [3/16] %v125, 128
    %135 = vxpose.xlu0.b32.cont [4/16] %v127, 128
    %136 = vxpose.xlu0.b32.cont [5/16] 0.0, 128
    %137 = vxpose.xlu0.b32.cont [6/16] 0.0, 128
    %138 = vxpose.xlu0.b32.cont [7/16] 0.0, 128
    %139 = vxpose.xlu0.b32.cont [8/16] 0.0, 128
    %140 = vxpose.xlu0.b32.cont [9/16] 0.0, 128
    %141 = vxpose.xlu0.b32.cont [10/16] 0.0, 128
    %142 = vxpose.xlu0.b32.cont [11/16] 0.0, 128
    %143 = vxpose.xlu0.b32.cont [12/16] 0.0, 128
    %144 = vxpose.xlu0.b32.cont [13/16] 0.0, 128
    %145 = vxpose.xlu0.b32.cont [14/16] 0.0, 128
    %146 = vxpose.xlu0.b32.cont [15/16] 0.0, 128
    %147 = vxpose.xlu0.b32.end [16/16] 0.0, 128
    %v148 = vpop.trf.xlu0
    %v149 = vpop.trf.xlu0
    %v150 = vpop.trf.xlu0
    %v151 = vpop.trf.xlu0
    %v152 = vpop.trf.xlu0
    %v153 = vpop.trf.xlu0
    %v154 = vpop.trf.xlu0
    %v155 = vpop.trf.xlu0
    %v156 = vpop.trf.xlu0
    %v157 = vpop.trf.xlu0
    %v158 = vpop.trf.xlu0
    %v159 = vpop.trf.xlu0
    %v160 = vpop.trf.xlu0
    %v161 = vpop.trf.xlu0
    %v162 = vpop.trf.xlu0
    %v163 = vpop.trf.xlu0
    %v164 = vpack.c.bf16 %v148, %v148
    %vm165 = vcmask 257024
    %166 = vst.msk [vmem:[#allocation4] sm:$0xf] %vm165, %v164
    %167 = vrot.lane.b32.xlu0 %v103, 56
    %v168 = vpop.permute.xlu0 %167
    %169 = vrot.lane.b32.xlu0 %v104, 56
    %v170 = vpop.permute.xlu0 %169
    %171 = vrot.lane.b32.xlu0 %v105, 56
    %v172 = vpop.permute.xlu0 %171
    %173 = vrot.lane.b32.xlu0 %v106, 56
    %v174 = vpop.permute.xlu0 %173
    %vm179 = vcmask 60416
    %180 = vst.msk [vmem:[%s3] sm:$0xf] %vm179, %v168
    %181 = vst.msk [vmem:[%s3 + $0x4] sm:$0xf] %vm179, %v170
    %182 = vst.msk [vmem:[%s3 + $0x8] sm:$0xf] %vm179, %v172
    %183 = vst.msk [vmem:[%s3 + $0xc] sm:$0xf] %vm179, %v174
    // Predicated region
    $region10: #{tpu_custom_call.1} parent=1 // pred_check
      _
    $region11: #{tpu_custom_call.1} parent=1 // pred_check_branch
      %185 = sbr.rel (0) target = $region13
    $region12: #{tpu_custom_call.1} parent=1 // pred_region
      %s187 = ssub.s32 256, 256
      %188 = vsyncadd [#allocation3], %s187
      %s189 = sshll.u32 [#allocation2], 4
      %s190 = int_to_ptr.vmem [resolvable:$true] %s189
      %195 = dma.vmem_to_hbm [thread:$0]  %s190, 256, %s2, [#allocation3], 64, 64, 4
    $region13: #{tpu_custom_call.1} parent=1 // pred_fallthru
      _
    // Predicated region
    $region14: #{tpu_custom_call.1} parent=1 // pred_check
      _
    $region15: #{tpu_custom_call.1} parent=1 // pred_check_branch
      %197 = sbr.rel (0) target = $region17
    $region16: #{tpu_custom_call.1} parent=1 // pred_region
      _
    $region17: #{tpu_custom_call.1} parent=1 // pred_fallthru
      _
    // Predicated region
    $region18: #{tpu_custom_call.1} parent=1 // pred_check
      _
    $region19: #{tpu_custom_call.1} parent=1 // pred_check_branch
      %199 = sbr.rel (0) target = $region21
    $region20: #{tpu_custom_call.1} parent=1 // pred_region
      %s201 = ssub.s32 64, 64
      %202 = vsyncadd [#allocation5], %s201
      %s204 = sshll.u32 [#allocation4], 4
      %s205 = int_to_ptr.vmem [resolvable:$true] %s204
      %207 = dma.vmem_to_hbm [thread:$0]  %s205, 64, %s4, [#allocation5]
    $region21: #{tpu_custom_call.1} parent=1 // pred_fallthru
      _
    // Predicated region
    $region22: #{tpu_custom_call.1} parent=1 // pred_check
      _
    $region23: #{tpu_custom_call.1} parent=1 // pred_check_branch
      %209 = sbr.rel (0) target = $region25
    $region24: #{tpu_custom_call.1} parent=1 // pred_region
      %210 = dma.done [#allocation3], 256
    $region25: #{tpu_custom_call.1} parent=1 // pred_fallthru
      _
    // Predicated region
    $region26: #{tpu_custom_call.1} parent=1 // pred_check
      _
    $region27: #{tpu_custom_call.1} parent=1 // pred_check_branch
      %212 = sbr.rel (0) target = $region29
    $region28: #{tpu_custom_call.1} parent=1 // pred_region
      _
    $region29: #{tpu_custom_call.1} parent=1 // pred_fallthru
      _
    // Predicated region
    $region30: #{tpu_custom_call.1} parent=1 // pred_check
      _
    $region31: #{tpu_custom_call.1} parent=1 // pred_check_branch
      %214 = sbr.rel (0) target = $region33
    $region32: #{tpu_custom_call.1} parent=1 // pred_region
      %215 = dma.done [#allocation5], 64
    $region33: #{tpu_custom_call.1} parent=1 // pred_fallthru
      _
    %216 = vsyncpa [#allocation3], 1
    %217 = vsyncpa [#allocation5], 1

</llo_original>
